<compile_context>
chip_gen: v6e
topology: v6e:2x2x1
jax: 0.10.0
libtpu: 0.0.40
codegen_flags: <defaults>
</compile_context>

<pallas_src>
import jax
import jax.numpy as jnp
from jax.experimental import pallas as pl
from jax.experimental.pallas import tpu as pltpu


def _round_up(a: int, b: int) -> int:
    return ((a + b - 1) // b) * b


def swiglu_kernel(x_ref, w1_ref, b1_ref, w2_ref, b2_ref, w3_ref, b3_ref, o_ref):
    # One token-tile per grid step; weights stay resident (constant index maps).
    x = x_ref[...]

    # MXU matmuls in the stored dtype, f32 accumulation.
    h1 = jnp.dot(x, w1_ref[...], preferred_element_type=jnp.float32) + b1_ref[...]
    h2 = jnp.dot(x, w2_ref[...], preferred_element_type=jnp.float32) + b2_ref[...]

    # silu(h1) * h2 in f32: sigmoid lands on the EUP slot, muls on the VPU.
    gated = (h1 * jax.nn.sigmoid(h1)) * h2

    # Cast to the weight dtype so the third matmul also takes the native MXU path.
    y = jnp.dot(gated.astype(w3_ref.dtype), w3_ref[...],
                preferred_element_type=jnp.float32) + b3_ref[...]
    o_ref[...] = y.astype(o_ref.dtype)


def _vmem_limit_bytes(tm, n_embd, inter, w_itemsize, act_itemsize, out_itemsize):
    # Resident weights + biases are double-buffered by BlockSpec, as are the
    # streaming x / out tiles; h1/h2/gated live values add ~3 * tm * inter f32.
    weights = (2 * n_embd * inter + inter * n_embd) * w_itemsize * 2
    biases = (2 * inter + n_embd) * 4 * 2
    acts = tm * n_embd * (act_itemsize + out_itemsize) * 2
    interm = tm * inter * 4 * 3
    est = int(1.25 * (weights + biases + acts + interm)) + (2 << 20)
    # Floor at the smallest scoped default (v5e: 16 MiB); cap at v7x physical.
    return max(min(est, 64 << 20), 16 << 20)


def swiglu_pallas(x, w1, b1, w2, b2, w3, b3, *, tm=None, param_dtype=None):
    """x: [T, n_embd]; w1,w2: [n_embd, inter]; w3: [inter, n_embd]; biases [1, out]."""
    T, n_embd = x.shape
    inter = w1.shape[1]
    out_dtype = x.dtype

    # Optionally keep weights/activations in an MXU-native narrow dtype (bf16):
    # halves weight VMEM residency and HBM->VMEM DMA bytes.
    if param_dtype is not None:
        w1, w2, w3 = (w.astype(param_dtype) for w in (w1, w2, w3))
        x = x.astype(param_dtype)
    b1, b2, b3 = (b.astype(jnp.float32) for b in (b1, b2, b3))

    # Token tile: multiple of 8 sublanes, up to 256 rows.  Tiny inputs collapse
    # to a single grid step.
    if tm is None:
        tm = min(_round_up(T, 8), 256)
    tm = _round_up(tm, 8)
    Tp = _round_up(T, tm)
    if Tp != T:
        x = jnp.pad(x, ((0, Tp - T), (0, 0)))
    grid = (Tp // tm,)

    vmem_limit = _vmem_limit_bytes(
        tm, n_embd, inter,
        w1.dtype.itemsize, x.dtype.itemsize, out_dtype.itemsize)

    # TODO(synk): for large models on v7x (64 MiB VMEM) switch to an inter-tiled
    # grid ("arbitrary" last axis + f32 accumulator scratch) instead of the
    # fully weight-resident layout used here.
    out = pl.pallas_call(
        swiglu_kernel,
        out_shape=jax.ShapeDtypeStruct((Tp, n_embd), out_dtype),
        grid_spec=pltpu.PrefetchScalarGridSpec(
            num_scalar_prefetch=0,
            grid=grid,
            in_specs=[
                pl.BlockSpec((tm, n_embd), lambda i: (i, 0)),      # x tile (streamed)
                pl.BlockSpec((n_embd, inter), lambda i: (0, 0)),   # w1 (resident)
                pl.BlockSpec((1, inter), lambda i: (0, 0)),        # b1
                pl.BlockSpec((n_embd, inter), lambda i: (0, 0)),   # w2 (resident)
                pl.BlockSpec((1, inter), lambda i: (0, 0)),        # b2
                pl.BlockSpec((inter, n_embd), lambda i: (0, 0)),   # w3 (resident)
                pl.BlockSpec((1, n_embd), lambda i: (0, 0)),       # b3
            ],
            out_specs=pl.BlockSpec((tm, n_embd), lambda i: (i, 0)),
        ),
        compiler_params=pltpu.CompilerParams(
            dimension_semantics=("parallel",),
            vmem_limit_bytes=vmem_limit),
    )(x, w1, b1, w2, b2, w3, b3)

    return out[:T] if Tp != T else out


def swiglu_ref(x, w1, b1, w2, b2, w3, b3):
    h1 = x @ w1 + b1
    h2 = x @ w2 + b2
    g = h1 * jax.nn.sigmoid(h1) * h2
    return g @ w3 + b3


if __name__ == "__main__":
    # Config: n_embd=32, intermediate_size=64, bias=True
    batch, seq, n_embd, inter = 2, 8, 32, 64

    key = jax.random.PRNGKey(0)
    kx, k1, k2, k3, kb1, kb2, kb3 = jax.random.split(key, 7)

    x = jax.random.normal(kx, (batch, seq, n_embd), dtype=jnp.float32)

    # nn.Linear weights are (out, in); keep them pre-transposed as (in, out).
    w1 = jax.random.normal(k1, (n_embd, inter), dtype=jnp.float32) * 0.05
    w2 = jax.random.normal(k2, (n_embd, inter), dtype=jnp.float32) * 0.05
    w3 = jax.random.normal(k3, (inter, n_embd), dtype=jnp.float32) * 0.05
    b1 = jax.random.normal(kb1, (1, inter), dtype=jnp.float32) * 0.05
    b2 = jax.random.normal(kb2, (1, inter), dtype=jnp.float32) * 0.05
    b3 = jax.random.normal(kb3, (1, n_embd), dtype=jnp.float32) * 0.05

    x2d = x.reshape(batch * seq, n_embd)
    y_ref = swiglu_ref(x2d, w1, b1, w2, b2, w3, b3)

    # f32 path (matches the PyTorch module's default dtype) -- tight check.
    y = swiglu_pallas(x2d, w1, b1, w2, b2, w3, b3)
    jax.block_until_ready(y)
    assert y.shape == (batch * seq, n_embd)
    assert jnp.allclose(y, y_ref, atol=1e-5, rtol=1e-5), "f32 mismatch vs reference"

    # bf16 weights/activations (MXU-native, half the weight VMEM/DMA) -- looser check.
    y_bf16 = swiglu_pallas(x2d, w1, b1, w2, b2, w3, b3, param_dtype=jnp.bfloat16)
    jax.block_until_ready(y_bf16)
    assert jnp.allclose(y_bf16, y_ref, atol=5e-2, rtol=5e-2), "bf16 mismatch vs reference"

    _ = y.reshape(batch, seq, n_embd)

    print("KERNEL_OK")
</pallas_src>

<mosaic_0001>
module attributes {stable_mosaic.version = 11 : i64} {
  func.func @swiglu_kernel(%arg0: i32, %arg1: memref<16x32xf32, #tpu.memory_space<vmem>>, %arg2: memref<32x64xf32, #tpu.memory_space<vmem>>, %arg3: memref<1x64xf32, #tpu.memory_space<vmem>>, %arg4: memref<32x64xf32, #tpu.memory_space<vmem>>, %arg5: memref<1x64xf32, #tpu.memory_space<vmem>>, %arg6: memref<64x32xf32, #tpu.memory_space<vmem>>, %arg7: memref<1x32xf32, #tpu.memory_space<vmem>>, %arg8: memref<16x32xf32, #tpu.memory_space<vmem>>) attributes {dimension_semantics = [#tpu.dimension_semantics<parallel>], iteration_bounds = array<i64: 1>, scalar_prefetch = 0 : i64, scratch_operands = 0 : i64, tpu.core_type = #tpu.core_type<tc>, window_params = [{transform_indices = @transform_0, window_bounds = array<i64: 16, 32>}, {pipeline_mode = #tpu.pipeline_mode<synchronous>, transform_indices = @transform_1, window_bounds = array<i64: 32, 64>}, {pipeline_mode = #tpu.pipeline_mode<synchronous>, transform_indices = @transform_2, window_bounds = array<i64: 1, 64>}, {pipeline_mode = #tpu.pipeline_mode<synchronous>, transform_indices = @transform_3, window_bounds = array<i64: 32, 64>}, {pipeline_mode = #tpu.pipeline_mode<synchronous>, transform_indices = @transform_4, window_bounds = array<i64: 1, 64>}, {pipeline_mode = #tpu.pipeline_mode<synchronous>, transform_indices = @transform_5, window_bounds = array<i64: 64, 32>}, {pipeline_mode = #tpu.pipeline_mode<synchronous>, transform_indices = @transform_6, window_bounds = array<i64: 1, 32>}, {transform_indices = @transform_7, window_bounds = array<i64: 16, 32>}]} {
    %c0 = arith.constant 0 : index
    %c0_0 = arith.constant 0 : index
    %0 = vector.load %arg1[%c0, %c0_0] : memref<16x32xf32, #tpu.memory_space<vmem>>, vector<16x32xf32>
    %c0_1 = arith.constant 0 : index
    %c0_2 = arith.constant 0 : index
    %1 = vector.load %arg2[%c0_1, %c0_2] : memref<32x64xf32, #tpu.memory_space<vmem>>, vector<32x64xf32>
    %cst = arith.constant dense<0.000000e+00> : vector<16x64xf32>
    %2 = tpu.matmul %0, %1, %cst {dimension_numbers = #tpu.dot_dimension_numbers<[1], [0], [0], [1], [0, 0, 1, 1], [], []>} : vector<16x32xf32>, vector<32x64xf32>, vector<16x64xf32> -> vector<16x64xf32>
    %c0_3 = arith.constant 0 : index
    %c0_4 = arith.constant 0 : index
    %3 = vector.load %arg3[%c0_3, %c0_4] : memref<1x64xf32, #tpu.memory_space<vmem>>, vector<1x64xf32>
    %4 = vector.broadcast %3 : vector<1x64xf32> to vector<16x64xf32>
    %5 = arith.addf %2, %4 : vector<16x64xf32>
    %c0_5 = arith.constant 0 : index
    %c0_6 = arith.constant 0 : index
    %6 = vector.load %arg4[%c0_5, %c0_6] : memref<32x64xf32, #tpu.memory_space<vmem>>, vector<32x64xf32>
    %cst_7 = arith.constant dense<0.000000e+00> : vector<16x64xf32>
    %7 = tpu.matmul %0, %6, %cst_7 {dimension_numbers = #tpu.dot_dimension_numbers<[1], [0], [0], [1], [0, 0, 1, 1], [], []>} : vector<16x32xf32>, vector<32x64xf32>, vector<16x64xf32> -> vector<16x64xf32>
    %c0_8 = arith.constant 0 : index
    %c0_9 = arith.constant 0 : index
    %8 = vector.load %arg5[%c0_8, %c0_9] : memref<1x64xf32, #tpu.memory_space<vmem>>, vector<1x64xf32>
    %9 = vector.broadcast %8 : vector<1x64xf32> to vector<16x64xf32>
    %10 = arith.addf %7, %9 : vector<16x64xf32>
    %11 = arith.negf %5 : vector<16x64xf32>
    %12 = math.exp %11 : vector<16x64xf32>
    %cst_10 = arith.constant 1.000000e+00 : f32
    %13 = vector.broadcast %cst_10 : f32 to vector<16x64xf32>
    %14 = arith.addf %13, %12 : vector<16x64xf32>
    %15 = arith.divf %13, %14 : vector<16x64xf32>
    %16 = arith.mulf %5, %15 : vector<16x64xf32>
    %17 = arith.mulf %16, %10 : vector<16x64xf32>
    %c0_11 = arith.constant 0 : index
    %c0_12 = arith.constant 0 : index
    %18 = vector.load %arg6[%c0_11, %c0_12] : memref<64x32xf32, #tpu.memory_space<vmem>>, vector<64x32xf32>
    %cst_13 = arith.constant dense<0.000000e+00> : vector<16x32xf32>
    %19 = tpu.matmul %17, %18, %cst_13 {dimension_numbers = #tpu.dot_dimension_numbers<[1], [0], [0], [1], [0, 0, 1, 1], [], []>} : vector<16x64xf32>, vector<64x32xf32>, vector<16x32xf32> -> vector<16x32xf32>
    %c0_14 = arith.constant 0 : index
    %c0_15 = arith.constant 0 : index
    %20 = vector.load %arg7[%c0_14, %c0_15] : memref<1x32xf32, #tpu.memory_space<vmem>>, vector<1x32xf32>
    %21 = vector.broadcast %20 : vector<1x32xf32> to vector<16x32xf32>
    %22 = arith.addf %19, %21 : vector<16x32xf32>
    %c0_16 = arith.constant 0 : index
    %c0_17 = arith.constant 0 : index
    %23 = vector.load %arg8[%c0_16, %c0_17] : memref<16x32xf32, #tpu.memory_space<vmem>>, vector<16x32xf32>
    tpu.vector_store %arg8[%c0_16, %c0_17], %22 {strides = array<i32>} : memref<16x32xf32, #tpu.memory_space<vmem>>, vector<16x32xf32>,
    return
  }
  func.func @transform_0(%arg0: i32) -> (i32, i32) {
    %c0_i32 = arith.constant 0 : i32
    %c0_i32_0 = arith.constant 0 : i32
    return %arg0, %c0_i32 : i32, i32
  }
  func.func @transform_1(%arg0: i32) -> (i32, i32) {
    %c0_i32 = arith.constant 0 : i32
    %c0_i32_0 = arith.constant 0 : i32
    %c0_i32_1 = arith.constant 0 : i32
    return %c0_i32, %c0_i32_0 : i32, i32
  }
  func.func @transform_2(%arg0: i32) -> (i32, i32) {
    %c0_i32 = arith.constant 0 : i32
    %c0_i32_0 = arith.constant 0 : i32
    %c0_i32_1 = arith.constant 0 : i32
    return %c0_i32, %c0_i32_0 : i32, i32
  }
  func.func @transform_3(%arg0: i32) -> (i32, i32) {
    %c0_i32 = arith.constant 0 : i32
    %c0_i32_0 = arith.constant 0 : i32
    %c0_i32_1 = arith.constant 0 : i32
    return %c0_i32, %c0_i32_0 : i32, i32
  }
  func.func @transform_4(%arg0: i32) -> (i32, i32) {
    %c0_i32 = arith.constant 0 : i32
    %c0_i32_0 = arith.constant 0 : i32
    %c0_i32_1 = arith.constant 0 : i32
    return %c0_i32, %c0_i32_0 : i32, i32
  }
  func.func @transform_5(%arg0: i32) -> (i32, i32) {
    %c0_i32 = arith.constant 0 : i32
    %c0_i32_0 = arith.constant 0 : i32
    %c0_i32_1 = arith.constant 0 : i32
    return %c0_i32, %c0_i32_0 : i32, i32
  }
  func.func @transform_6(%arg0: i32) -> (i32, i32) {
    %c0_i32 = arith.constant 0 : i32
    %c0_i32_0 = arith.constant 0 : i32
    %c0_i32_1 = arith.constant 0 : i32
    return %c0_i32, %c0_i32_0 : i32, i32
  }
  func.func @transform_7(%arg0: i32) -> (i32, i32) {
    %c0_i32 = arith.constant 0 : i32
    %c0_i32_0 = arith.constant 0 : i32
    return %arg0, %c0_i32 : i32, i32
  }
}

</mosaic_0001>

<llo_original>
// kernel: tpu_custom_call.1
$region0: #{tpu_custom_call.1}
  #allocation0 [shape = 'u32[]', space=smem, size = 0x4, offset = 0x4, fixed_abs, tag = 'smem constant byte address 0x4 - core index']
  #allocation1 [shape = 'u32[144,128]{1,0:T(1,128)}', space=vmem, size = 0x12000, scoped, tag = 'internal scratch']
  %s0 = inlined_call_operand.vmem [shape: f32[16,32], index: 0, kind: input, shape index: {}]
  %s1 = inlined_call_operand.vmem [shape: f32[32,64], index: 1, kind: input, shape index: {}]
  %s2 = inlined_call_operand.vmem [shape: f32[1,64], index: 2, kind: input, shape index: {}]
  %s3 = inlined_call_operand.vmem [shape: f32[32,64], index: 3, kind: input, shape index: {}]
  %s4 = inlined_call_operand.vmem [shape: f32[1,64], index: 4, kind: input, shape index: {}]
  %s5 = inlined_call_operand.vmem [shape: f32[64,32], index: 5, kind: input, shape index: {}]
  %s6 = inlined_call_operand.vmem [shape: f32[1,32], index: 6, kind: input, shape index: {}]
  %s7 = inlined_call_operand.hbm [shape: f32[16,32], index: 7, kind: output, shape index: {}]
  %s8 = sld [smem:[#allocation0]]
  $region38: #{tpu_custom_call.1} parent=0
    _
  %s10 = ssub.s32 1, %s8
  %s11 = scalar_select 0, %s10, %s8
  $region1: #{tpu_custom_call.1} parent=0
    #allocation2 [shape = 'u8[8192]{0}', space=vmem, size = 0x2000, scoped, tag = 'output window, operand 0, single buffered']
    #allocation3 [shape = 's32[1]{0}', space=sflag, size = 0x4, scoped, tag = 'scoped memory for tpu_custom_call.1']
    %12 = vsyncpa [#allocation3], 0
    // Predicated region
    $region2: #{tpu_custom_call.1} parent=1 // pred_check
      _
    $region3: #{tpu_custom_call.1} parent=1 // pred_check_branch
      %14 = sbr.rel (0) target = $region5
    $region4: #{tpu_custom_call.1} parent=1 // pred_region
      _
    $region5: #{tpu_custom_call.1} parent=1 // pred_fallthru
      _
    // Predicated region
    $region6: #{tpu_custom_call.1} parent=1 // pred_check
      _
    $region7: #{tpu_custom_call.1} parent=1 // pred_check_branch
      %16 = sbr.rel (0) target = $region9
    $region8: #{tpu_custom_call.1} parent=1 // pred_region
      _
    $region9: #{tpu_custom_call.1} parent=1 // pred_fallthru
      _
    // Predicated region
    $region10: #{tpu_custom_call.1} parent=1 // pred_check
      _
    $region11: #{tpu_custom_call.1} parent=1 // pred_check_branch
      %18 = sbr.rel (0) target = $region13
    $region12: #{tpu_custom_call.1} parent=1 // pred_region
      _
    $region13: #{tpu_custom_call.1} parent=1 // pred_fallthru
      _
    // Predicated region
    $region14: #{tpu_custom_call.1} parent=1 // pred_check
      _
    $region15: #{tpu_custom_call.1} parent=1 // pred_check_branch
      %20 = sbr.rel (0) target = $region17
    $region16: #{tpu_custom_call.1} parent=1 // pred_region
      _
    $region17: #{tpu_custom_call.1} parent=1 // pred_fallthru
      _
    // Predicated region
    $region18: #{tpu_custom_call.1} parent=1 // pred_check
      _
    $region19: #{tpu_custom_call.1} parent=1 // pred_check_branch
      %22 = sbr.rel (0) target = $region21
    $region20: #{tpu_custom_call.1} parent=1 // pred_region
      _
    $region21: #{tpu_custom_call.1} parent=1 // pred_fallthru
      _
    // Predicated region
    $region22: #{tpu_custom_call.1} parent=1 // pred_check
      _
    $region23: #{tpu_custom_call.1} parent=1 // pred_check_branch
      %24 = sbr.rel (0) target = $region25
    $region24: #{tpu_custom_call.1} parent=1 // pred_region
      _
    $region25: #{tpu_custom_call.1} parent=1 // pred_fallthru
      _
    // Predicated region
    $region26: #{tpu_custom_call.1} parent=1 // pred_check
      _
    $region27: #{tpu_custom_call.1} parent=1 // pred_check_branch
      %26 = sbr.rel (0) target = $region29
    $region28: #{tpu_custom_call.1} parent=1 // pred_region
      _
    $region29: #{tpu_custom_call.1} parent=1 // pred_fallthru
      _
    %v27 = vld [vmem:[%s0] sm:$0xff]
    %v28 = vld [vmem:[%s0 + $0x8] sm:$0xff]
    %v29 = vld [vmem:[%s1] sm:$0xff]
    %v30 = vld [vmem:[%s1 + $0x8] sm:$0xff]
    %v31 = vld [vmem:[%s1 + $0x10] sm:$0xff]
    %v32 = vld [vmem:[%s1 + $0x18] sm:$0xff]
    %v33 = vld [vmem:[%s2] sm:$0x1]
    %v35 = vlaneseq
    %v36 = vshrl.u32 %v35, 7
    %v37 = vsub.s32 0, %v36
    %v38 = vrot.slane %v33, %v37
    %vm40 = vcmask 261120
    %v42 = vsel %vm40, %v27, 0
    %v45 = vsel %vm40, %v28, 0
    %47 = vmatprep.subr.mxu0 0.0
    %48 = vmatpush1.msra.mxu0 0.0
    %49 = vmatprep.subr.mxu0 0.0
    %50 = vmatpush1.msra.mxu0 0.0
    %51 = vmatprep.subr.mxu0 0.0
    %52 = vmatpush1.msra.mxu0 0.0
    %53 = vmatprep.subr.mxu0 0.0
    %54 = vmatpush1.msra.mxu0 0.0
    %55 = vmatprep.subr.mxu0 0.0
    %56 = vmatpush1.msra.mxu0 0.0
    %57 = vmatprep.subr.mxu0 0.0
    %58 = vmatpush1.msra.mxu0 0.0
    %59 = vmatprep.subr.mxu0 0.0
    %60 = vmatpush1.msra.mxu0 0.0
    %61 = vmatprep.subr.mxu0 0.0
    %62 = vmatpush1.msra.mxu0 0.0
    %63 = vmatprep.subr.mxu0 0.0
    %64 = vmatpush1.msra.mxu0 0.0
    %65 = vmatprep.subr.mxu0 0.0
    %66 = vmatpush1.msra.mxu0 0.0
    %67 = vmatprep.subr.mxu0 0.0
    %68 = vmatpush1.msra.mxu0 0.0
    %69 = vmatprep.subr.mxu0 0.0
    %70 = vmatpush1.msra.mxu0 0.0
    %71 = vmatprep.subr.mxu0 0.0
    %72 = vmatpush1.msra.mxu0 %v32
    %73 = vmatprep.subr.mxu0 0.0
    %74 = vmatpush1.msra.mxu0 %v31
    %75 = vmatprep.subr.mxu0 0.0
    %76 = vmatpush1.msra.mxu0 %v30
    %77 = vmatprep.subr.mxu0 0.0
    %78 = vmatpush1.msra.mxu0 %v29
    %79 = vmatprep.subr.mxu0 0.0
    %80 = vmatpush2.msra.mxu0 0.0
    %81 = vmatprep.subr.mxu0 0.0
    %82 = vmatpush2.msra.mxu0 0.0
    %83 = vmatprep.subr.mxu0 0.0
    %84 = vmatpush2.msra.mxu0 0.0
    %85 = vmatprep.subr.mxu0 0.0
    %86 = vmatpush2.msra.mxu0 0.0
    %87 = vmatprep.subr.mxu0 0.0
    %88 = vmatpush2.msra.mxu0 0.0
    %89 = vmatprep.subr.mxu0 0.0
    %90 = vmatpush2.msra.mxu0 0.0
    %91 = vmatprep.subr.mxu0 0.0
    %92 = vmatpush2.msra.mxu0 0.0
    %93 = vmatprep.subr.mxu0 0.0
    %94 = vmatpush2.msra.mxu0 0.0
    %95 = vmatprep.subr.mxu0 0.0
    %96 = vmatpush2.msra.mxu0 0.0
    %97 = vmatprep.subr.mxu0 0.0
    %98 = vmatpush2.msra.mxu0 0.0
    %99 = vmatprep.subr.mxu0 0.0
    %100 = vmatpush2.msra.mxu0 0.0
    %101 = vmatprep.subr.mxu0 0.0
    %102 = vmatpush2.msra.mxu0 0.0
    %103 = vmatprep.subr.mxu0 0.0
    %104 = vmatpush2.msra.mxu0 0.0
    %105 = vmatprep.subr.mxu0 0.0
    %106 = vmatpush2.msra.mxu0 0.0
    %107 = vmatprep.subr.mxu0 0.0
    %108 = vmatpush2.msra.mxu0 0.0
    %109 = vmatprep.subr.mxu0 0.0
    %110 = vmatpush2.msra.mxu0 0.0
    %111 = vmatprep.mubr.f32.mxu0 0.0
    %112 = vmatmul.mubr.f32.gmra.mxu0 %v42
    %v113 = vpop.f32.mrf.mxu0
    %v114 = vadd.f32 %v38, %v113
    %v115 = vpop.f32.mrf.mxu0
    %116 = vmatprep.mubr.f32.mxu0 0.0
    %117 = vmatmul.mubr.f32.gmra.mxu0 %v45
    %v118 = vpop.f32.mrf.mxu0
    %v119 = vadd.f32 %v38, %v118
    %v120 = vpop.f32.mrf.mxu0
    %121 = vdwg.mxu0
    %v122 = vld [vmem:[%s3] sm:$0xff]
    %v123 = vld [vmem:[%s3 + $0x8] sm:$0xff]
    %v124 = vld [vmem:[%s3 + $0x10] sm:$0xff]
    %v125 = vld [vmem:[%s3 + $0x18] sm:$0xff]
    %v126 = vld [vmem:[%s4] sm:$0x1]
    %v128 = vlaneseq
    %v129 = vshrl.u32 %v128, 7
    %v130 = vsub.s32 0, %v129
    %v131 = vrot.slane %v126, %v130
    %133 = vmatprep.subr.mxu0 0.0
    %134 = vmatpush1.msra.mxu0 0.0
    %135 = vmatprep.subr.mxu0 0.0
    %136 = vmatpush1.msra.mxu0 0.0
    %137 = vmatprep.subr.mxu0 0.0
    %138 = vmatpush1.msra.mxu0 0.0
    %139 = vmatprep.subr.mxu0 0.0
    %140 = vmatpush1.msra.mxu0 0.0
    %141 = vmatprep.subr.mxu0 0.0
    %142 = vmatpush1.msra.mxu0 0.0
    %143 = vmatprep.subr.mxu0 0.0
    %144 = vmatpush1.msra.mxu0 0.0
    %145 = vmatprep.subr.mxu0 0.0
    %146 = vmatpush1.msra.mxu0 0.0
    %147 = vmatprep.subr.mxu0 0.0
    %148 = vmatpush1.msra.mxu0 0.0
    %149 = vmatprep.subr.mxu0 0.0
    %150 = vmatpush1.msra.mxu0 0.0
    %151 = vmatprep.subr.mxu0 0.0
    %152 = vmatpush1.msra.mxu0 0.0
    %153 = vmatprep.subr.mxu0 0.0
    %154 = vmatpush1.msra.mxu0 0.0
    %155 = vmatprep.subr.mxu0 0.0
    %156 = vmatpush1.msra.mxu0 0.0
    %157 = vmatprep.subr.mxu0 0.0
    %158 = vmatpush1.msra.mxu0 %v125
    %159 = vmatprep.subr.mxu0 0.0
    %160 = vmatpush1.msra.mxu0 %v124
    %161 = vmatprep.subr.mxu0 0.0
    %162 = vmatpush1.msra.mxu0 %v123
    %163 = vmatprep.subr.mxu0 0.0
    %164 = vmatpush1.msra.mxu0 %v122
    %165 = vmatprep.subr.mxu0 0.0
    %166 = vmatpush2.msra.mxu0 0.0
    %167 = vmatprep.subr.mxu0 0.0
    %168 = vmatpush2.msra.mxu0 0.0
    %169 = vmatprep.subr.mxu0 0.0
    %170 = vmatpush2.msra.mxu0 0.0
    %171 = vmatprep.subr.mxu0 0.0
    %172 = vmatpush2.msra.mxu0 0.0
    %173 = vmatprep.subr.mxu0 0.0
    %174 = vmatpush2.msra.mxu0 0.0
    %175 = vmatprep.subr.mxu0 0.0
    %176 = vmatpush2.msra.mxu0 0.0
    %177 = vmatprep.subr.mxu0 0.0
    %178 = vmatpush2.msra.mxu0 0.0
    %179 = vmatprep.subr.mxu0 0.0
    %180 = vmatpush2.msra.mxu0 0.0
    %181 = vmatprep.subr.mxu0 0.0
    %182 = vmatpush2.msra.mxu0 0.0
    %183 = vmatprep.subr.mxu0 0.0
    %184 = vmatpush2.msra.mxu0 0.0
    %185 = vmatprep.subr.mxu0 0.0
    %186 = vmatpush2.msra.mxu0 0.0
    %187 = vmatprep.subr.mxu0 0.0
    %188 = vmatpush2.msra.mxu0 0.0
    %189 = vmatprep.subr.mxu0 0.0
    %190 = vmatpush2.msra.mxu0 0.0
    %191 = vmatprep.subr.mxu0 0.0
    %192 = vmatpush2.msra.mxu0 0.0
    %193 = vmatprep.subr.mxu0 0.0
    %194 = vmatpush2.msra.mxu0 0.0
    %195 = vmatprep.subr.mxu0 0.0
    %196 = vmatpush2.msra.mxu0 0.0
    %197 = vmatprep.mubr.f32.mxu0 0.0
    %198 = vmatmul.mubr.f32.gmra.mxu0 %v42
    %v199 = vpop.f32.mrf.mxu0
    %v200 = vadd.f32 %v131, %v199
    %v201 = vpop.f32.mrf.mxu0
    %202 = vmatprep.mubr.f32.mxu0 0.0
    %203 = vmatmul.mubr.f32.gmra.mxu0 %v45
    %v204 = vpop.f32.mrf.mxu0
    %v205 = vadd.f32 %v131, %v204
    %v206 = vpop.f32.mrf.mxu0
    %207 = vdwg.mxu0
    %v208 = vxor.u32 %v114, 2147483648
    %v209 = vxor.u32 %v119, 2147483648
    %v210 = vmul.f32 %v208, 1.442695
    %v211 = vpow.pop %v210
    %v212 = vmul.f32 %v209, 1.442695
    %v213 = vpow.pop %v212
    %v214 = vadd.f32 %v211, 1.0
    %v215 = vadd.f32 %v213, 1.0
    %v216 = vrcp.pop %v214
    %v217 = vmul.f32 1.0, %v216
    %v218 = vrcp.pop %v215
    %v219 = vmul.f32 1.0, %v218
    %v220 = vmul.f32 %v114, %v217
    %v221 = vmul.f32 %v119, %v219
    %v222 = vmul.f32 %v220, %v200
    %v223 = vmul.f32 %v221, %v205
    %v224 = vld [vmem:[%s5] sm:$0xff]
    %v225 = vld [vmem:[%s5 + $0x8] sm:$0xff]
    %v226 = vld [vmem:[%s5 + $0x10] sm:$0xff]
    %v227 = vld [vmem:[%s5 + $0x18] sm:$0xff]
    %v228 = vld [vmem:[%s5 + $0x20] sm:$0xff]
    %v229 = vld [vmem:[%s5 + $0x28] sm:$0xff]
    %v230 = vld [vmem:[%s5 + $0x30] sm:$0xff]
    %v231 = vld [vmem:[%s5 + $0x38] sm:$0xff]
    %v232 = vld [vmem:[%s6] sm:$0x1]
    %v234 = vlaneseq
    %v235 = vshrl.u32 %v234, 7
    %v236 = vsub.s32 0, %v235
    %v237 = vrot.slane %v232, %v236
    %vm239 = vcmask 523264
    %v241 = vsel %vm239, %v222, 0
    %v244 = vsel %vm239, %v223, 0
    %246 = vmatprep.subr.mxu0 0.0
    %247 = vmatpush1.msra.mxu0 0.0
    %248 = vmatprep.subr.mxu0 0.0
    %249 = vmatpush1.msra.mxu0 0.0
    %250 = vmatprep.subr.mxu0 0.0
    %251 = vmatpush1.msra.mxu0 0.0
    %252 = vmatprep.subr.mxu0 0.0
    %253 = vmatpush1.msra.mxu0 0.0
    %254 = vmatprep.subr.mxu0 0.0
    %255 = vmatpush1.msra.mxu0 0.0
    %256 = vmatprep.subr.mxu0 0.0
    %257 = vmatpush1.msra.mxu0 0.0
    %258 = vmatprep.subr.mxu0 0.0
    %259 = vmatpush1.msra.mxu0 0.0
    %260 = vmatprep.subr.mxu0 0.0
    %261 = vmatpush1.msra.mxu0 0.0
    %262 = vmatprep.subr.mxu0 0.0
    %263 = vmatpush1.msra.mxu0 %v231
    %264 = vmatprep.subr.mxu0 0.0
    %265 = vmatpush1.msra.mxu0 %v230
    %266 = vmatprep.subr.mxu0 0.0
    %267 = vmatpush1.msra.mxu0 %v229
    %268 = vmatprep.subr.mxu0 0.0
    %269 = vmatpush1.msra.mxu0 %v228
    %270 = vmatprep.subr.mxu0 0.0
    %271 = vmatpush1.msra.mxu0 %v227
    %272 = vmatprep.subr.mxu0 0.0
    %273 = vmatpush1.msra.mxu0 %v226
    %274 = vmatprep.subr.mxu0 0.0
    %275 = vmatpush1.msra.mxu0 %v225
    %276 = vmatprep.subr.mxu0 0.0
    %277 = vmatpush1.msra.mxu0 %v224
    %278 = vmatprep.subr.mxu0 0.0
    %279 = vmatpush2.msra.mxu0 0.0
    %280 = vmatprep.subr.mxu0 0.0
    %281 = vmatpush2.msra.mxu0 0.0
    %282 = vmatprep.subr.mxu0 0.0
    %283 = vmatpush2.msra.mxu0 0.0
    %284 = vmatprep.subr.mxu0 0.0
    %285 = vmatpush2.msra.mxu0 0.0
    %286 = vmatprep.subr.mxu0 0.0
    %287 = vmatpush2.msra.mxu0 0.0
    %288 = vmatprep.subr.mxu0 0.0
    %289 = vmatpush2.msra.mxu0 0.0
    %290 = vmatprep.subr.mxu0 0.0
    %291 = vmatpush2.msra.mxu0 0.0
    %292 = vmatprep.subr.mxu0 0.0
    %293 = vmatpush2.msra.mxu0 0.0
    %294 = vmatprep.subr.mxu0 0.0
    %295 = vmatpush2.msra.mxu0 0.0
    %296 = vmatprep.subr.mxu0 0.0
    %297 = vmatpush2.msra.mxu0 0.0
    %298 = vmatprep.subr.mxu0 0.0
    %299 = vmatpush2.msra.mxu0 0.0
    %300 = vmatprep.subr.mxu0 0.0
    %301 = vmatpush2.msra.mxu0 0.0
    %302 = vmatprep.subr.mxu0 0.0
    %303 = vmatpush2.msra.mxu0 0.0
    %304 = vmatprep.subr.mxu0 0.0
    %305 = vmatpush2.msra.mxu0 0.0
    %306 = vmatprep.subr.mxu0 0.0
    %307 = vmatpush2.msra.mxu0 0.0
    %308 = vmatprep.subr.mxu0 0.0
    %309 = vmatpush2.msra.mxu0 0.0
    %310 = vmatprep.mubr.f32.mxu0 0.0
    %311 = vmatmul.mubr.f32.gmra.mxu0 %v241
    %v312 = vpop.f32.mrf.mxu0
    %v313 = vadd.f32 %v237, %v312
    %v314 = vpop.f32.mrf.mxu0
    %315 = vmatprep.mubr.f32.mxu0 0.0
    %316 = vmatmul.mubr.f32.gmra.mxu0 %v244
    %v317 = vpop.f32.mrf.mxu0
    %v318 = vadd.f32 %v237, %v317
    %v319 = vpop.f32.mrf.mxu0
    %320 = vdwg.mxu0
    %321 = vst.msk [vmem:[#allocation2] sm:$0xff] %vm40, %v313
    %322 = vst.msk [vmem:[#allocation2 + $0x8] sm:$0xff] %vm40, %v318
    // Predicated region
    $region30: #{tpu_custom_call.1} parent=1 // pred_check
      _
    $region31: #{tpu_custom_call.1} parent=1 // pred_check_branch
      %324 = sbr.rel (0) target = $region33
    $region32: #{tpu_custom_call.1} parent=1 // pred_region
      %s326 = ssub.s32 256, 256
      %327 = vsyncadd [#allocation3], %s326
      %s328 = sshll.u32 [#allocation2], 4
      %s329 = int_to_ptr.vmem [resolvable:$true] %s328
      %334 = dma.vmem_to_hbm [thread:$0]  %s329, 256, %s7, [#allocation3], 128, 128, 8
    $region33: #{tpu_custom_call.1} parent=1 // pred_fallthru
      _
    // Predicated region
    $region34: #{tpu_custom_call.1} parent=1 // pred_check
      _
    $region35: #{tpu_custom_call.1} parent=1 // pred_check_branch
      %336 = sbr.rel (0) target = $region37
    $region36: #{tpu_custom_call.1} parent=1 // pred_region
      %337 = dma.done [#allocation3], 256
    $region37: #{tpu_custom_call.1} parent=1 // pred_fallthru
      _
    %338 = vsyncpa [#allocation3], 1

</llo_original>
